<compile_context>
chip_gen: v7x
topology: tpu7x:2x2x1
jax: 0.10.0
libtpu: 0.0.40
codegen_flags: <defaults>
</compile_context>

<pallas_src>
import functools

import jax
import jax.numpy as jnp
from jax import lax
from jax.experimental import pallas as pl
from jax.experimental.pallas import tpu as pltpu


def _round_up(x: int, m: int) -> int:
    return ((x + m - 1) // m) * m


def _time2vec_kernel(tau_ref, w_ref, beta_ref, o_ref, *, use_cos):
    # tau_ref:  (TN, K)    packed taus | ones column | zero pad  (K = round_up(P+1, 8))
    # w_ref:    (2, K, L)  stacked MXU RHS:
    #                        [0] -> pre-activation   lin  = tau*w + b          (per lane)
    #                        [1] -> aperiodic term   W[0]*(tau*w_ap + b_ap) on lane 0 of
    #                               each group, 0 elsewhere
    # beta_ref: (1, L)     periodic scale W[1:] per lane (0 on aperiodic / pad lanes)
    # o_ref:    (TN, L)    lane-dense output block (L is a multiple of 128)
    tau = tau_ref[...]
    # Linear expansion + bias + aperiodic term run on the (otherwise idle) MXU.
    # HIGHEST precision keeps full f32 accuracy (multi-pass) to match the reference.
    lin = jnp.dot(tau, w_ref[0], preferred_element_type=jnp.float32,
                  precision=lax.Precision.HIGHEST)
    aper = jnp.dot(tau, w_ref[1], preferred_element_type=jnp.float32,
                   precision=lax.Precision.HIGHEST)
    f = jnp.cos if use_cos else jnp.sin
    # VALU tail per element: the sin/cos polynomial + one mul + one add.
    o_ref[...] = (aper + beta_ref[...] * f(lin)).astype(o_ref.dtype)


def time2vec(tau, w_ap, b_ap, w_p, b_p, W, *, activation="sin",
             tile_rows=4096, out_dtype=jnp.float32):
    """tau: (B, S) float -> (B, S, D) with D = W.shape[0]. Matches the PyTorch forward."""
    assert activation in ("sin", "cos")
    B, S = tau.shape
    D = int(W.shape[0])
    N = B * S
    f32 = jnp.float32

    # ---- lane-dense packing: P embedding groups of Dp >= D lanes per 128-lane row ----
    if D >= 128:
        P, Dp = 1, _round_up(D, 128)
    else:
        P = 1
        while 2 * P * D <= 128:          # largest power-of-two P with P*D <= 128
            P *= 2
        Dp = 128 // P                    # Dp >= D and P * Dp == 128
    L = P * Dp                           # always a multiple of 128 -> unmasked stores

    # ---- pack the two tiny Linear(1, .) layers + W into MXU RHS / lane scales ----
    wcoef = jnp.concatenate([w_ap.reshape(1), w_p.reshape(-1)]).astype(f32)   # (D,)
    bcoef = jnp.concatenate([b_ap.reshape(1), b_p.reshape(-1)]).astype(f32)   # (D,)
    Wv = W.astype(f32).reshape(-1)                                            # (D,)
    pad = Dp - D
    wcoef_p = jnp.pad(wcoef, (0, pad))                                        # (Dp,)
    bcoef_p = jnp.pad(bcoef, (0, pad))
    beta_p = jnp.pad(Wv.at[0].set(0.0), (0, pad))                             # (Dp,)
    aw = jnp.zeros((Dp,), f32).at[0].set(Wv[0] * wcoef[0])                    # (Dp,)
    ab = jnp.zeros((Dp,), f32).at[0].set(Wv[0] * bcoef[0])

    K = _round_up(P + 1, 8)              # contraction dim fed to the MXU
    eye = jnp.eye(P, dtype=f32)

    def _rhs(row_w, row_b):
        # rows 0..P-1: group-diagonal weights; row P: bias (matched with the ones
        # column of tau_aug); remaining rows: zero padding up to K.
        return jnp.concatenate(
            [jnp.kron(eye, row_w.reshape(1, Dp)),
             jnp.tile(row_b.reshape(1, Dp), (1, P)),
             jnp.zeros((K - P - 1, L), f32)], axis=0)                          # (K, L)

    w_stack = jnp.stack([_rhs(wcoef_p, bcoef_p), _rhs(aw, ab)], axis=0)        # (2, K, L)
    beta_row = jnp.tile(beta_p.reshape(1, Dp), (1, P))                         # (1, L)

    # ---- pack tau into rows of P values + a ones column (bias folded into the dot) ----
    R = pl.cdiv(N, P)
    Rpad = _round_up(R, 8)               # minimal padding: sublane multiple only
    tau_flat = tau.reshape(-1).astype(f32)
    if Rpad * P != N:
        tau_flat = jnp.pad(tau_flat, (0, Rpad * P - N))
    cols = [tau_flat.reshape(Rpad, P), jnp.ones((Rpad, 1), f32)]
    if K > P + 1:
        cols.append(jnp.zeros((Rpad, K - P - 1), f32))
    tau_aug = jnp.concatenate(cols, axis=1)                                    # (Rpad, K)

    # ---- row tiling: large tiles amortize per-step overhead; keep >= 2 parallel grid
    #      steps when there is enough work so v7x's two TensorCores both get a share.
    #      cdiv grid -> trailing partial block is masked, no dead full-tile writeback.
    TN = min(_round_up(tile_rows, 8), Rpad)
    if Rpad >= 2 * 2048 and pl.cdiv(Rpad, TN) < 2:
        TN = _round_up(pl.cdiv(Rpad, 2), 8)
    grid = (pl.cdiv(Rpad, TN),)

    out_elems = Rpad * L
    cost = pl.CostEstimate(
        flops=int(out_elems * (4 * K + 2)),
        transcendentals=int(out_elems),
        bytes_accessed=int(4 * (Rpad * K + 2 * K * L + L)
                           + out_elems * jnp.dtype(out_dtype).itemsize),
    )

    kernel = functools.partial(_time2vec_kernel, use_cos=(activation == "cos"))
    out_packed = pl.pallas_call(
        kernel,
        out_shape=jax.ShapeDtypeStruct((Rpad, L), out_dtype),
        grid_spec=pltpu.PrefetchScalarGridSpec(
            num_scalar_prefetch=0,
            grid=grid,
            in_specs=[
                pl.BlockSpec((TN, K), lambda i: (i, 0)),
                pl.BlockSpec((2, K, L), lambda i: (0, 0, 0)),   # resident constants
                pl.BlockSpec((1, L), lambda i: (0, 0)),
            ],
            out_specs=pl.BlockSpec((TN, L), lambda i: (i, 0)),
        ),
        compiler_params=pltpu.CompilerParams(
            dimension_semantics=("parallel",),
        ),
        cost_estimate=cost,
    )(tau_aug, w_stack, beta_row)

    # Each packed row holds P consecutive embeddings of Dp lanes each; the reshape is a
    # free row-major view, the row slice drops padded rows, and the lane slice is only
    # needed when D does not divide 128.
    out_rows = out_packed.reshape(Rpad * P, Dp)
    out = out_rows[:N] if Dp == D else out_rows[:N, :D]
    return out.reshape(B, S, D)


def time2vec_ref(tau, w_ap, b_ap, w_p, b_p, W, *, activation="sin"):
    # Pure-JAX reference mirroring the PyTorch forward.
    f = jnp.cos if activation == "cos" else jnp.sin
    t = tau[..., None].astype(jnp.float32)                 # (B, S, 1)
    tau_ap = t * w_ap + b_ap                               # Linear(1, 1)
    tau_p = f(t * w_p.reshape(1, 1, -1) + b_p)             # f(Linear(1, D-1))
    return jnp.concatenate([tau_ap, tau_p], axis=-1) * W


if __name__ == "__main__":
    key = jax.random.PRNGKey(0)
    B, S, D = 2, 8, 32  # time_emb_size = 32

    k_tau, k_wap, k_bap, k_wp, k_bp, k_W = jax.random.split(key, 6)
    tau = jax.random.normal(k_tau, (B, S), dtype=jnp.float32)

    # Parameter shapes from nn.Linear(1,1), nn.Linear(1,D-1), W (D,)
    w_ap = jax.random.normal(k_wap, (1,), dtype=jnp.float32)
    b_ap = jax.random.normal(k_bap, (1,), dtype=jnp.float32)
    w_p = jax.random.normal(k_wp, (D - 1,), dtype=jnp.float32)
    b_p = jax.random.normal(k_bp, (D - 1,), dtype=jnp.float32)
    W = jax.random.normal(k_W, (D,), dtype=jnp.float32)

    # Case 1: small shape where D divides 128 (free view on unpack), sin activation.
    out = jax.block_until_ready(time2vec(tau, w_ap, b_ap, w_p, b_p, W))
    ref = time2vec_ref(tau, w_ap, b_ap, w_p, b_p, W)
    assert out.shape == (B, S, D)
    assert jnp.allclose(out, ref, atol=1e-5, rtol=1e-5), "mismatch vs reference (sin)"

    # Case 2: seq length not a multiple of the packing factor (exercises padding), cos.
    B2, S2 = 4, 100
    tau2 = jax.random.normal(jax.random.PRNGKey(1), (B2, S2), dtype=jnp.float32)
    out2 = jax.block_until_ready(
        time2vec(tau2, w_ap, b_ap, w_p, b_p, W, activation="cos")
    )
    ref2 = time2vec_ref(tau2, w_ap, b_ap, w_p, b_p, W, activation="cos")
    assert out2.shape == (B2, S2, D)
    assert jnp.allclose(out2, ref2, atol=1e-5, rtol=1e-5), "mismatch vs reference (cos)"

    # Case 3: D that does not divide 128 (exercises per-group lane padding, Dp > D).
    D3, B3, S3 = 20, 3, 7
    k3 = jax.random.split(jax.random.PRNGKey(2), 6)
    tau3 = jax.random.normal(k3[0], (B3, S3), dtype=jnp.float32)
    w_ap3 = jax.random.normal(k3[1], (1,), dtype=jnp.float32)
    b_ap3 = jax.random.normal(k3[2], (1,), dtype=jnp.float32)
    w_p3 = jax.random.normal(k3[3], (D3 - 1,), dtype=jnp.float32)
    b_p3 = jax.random.normal(k3[4], (D3 - 1,), dtype=jnp.float32)
    W3 = jax.random.normal(k3[5], (D3,), dtype=jnp.float32)
    out3 = jax.block_until_ready(time2vec(tau3, w_ap3, b_ap3, w_p3, b_p3, W3))
    ref3 = time2vec_ref(tau3, w_ap3, b_ap3, w_p3, b_p3, W3)
    assert out3.shape == (B3, S3, D3)
    assert jnp.allclose(out3, ref3, atol=1e-5, rtol=1e-5), "mismatch vs reference (D=20)"

    print("KERNEL_OK")
</pallas_src>

<mosaic_0001>
module attributes {stable_mosaic.version = 11 : i64} {
  func.func @_time2vec_kernel(%arg0: i32, %arg1: memref<8x8xf32, #tpu.memory_space<vmem>>, %arg2: memref<2x8x128xf32, #tpu.memory_space<vmem>>, %arg3: memref<1x128xf32, #tpu.memory_space<vmem>>, %arg4: memref<8x128xf32, #tpu.memory_space<vmem>>) attributes {dimension_semantics = [#tpu.dimension_semantics<parallel>], iteration_bounds = array<i64: 1>, scalar_prefetch = 0 : i64, scratch_operands = 0 : i64, tpu.core_type = #tpu.core_type<tc>, window_params = [{transform_indices = @transform_0, window_bounds = array<i64: 8, 8>}, {pipeline_mode = #tpu.pipeline_mode<synchronous>, transform_indices = @transform_1, window_bounds = array<i64: 2, 8, 128>}, {pipeline_mode = #tpu.pipeline_mode<synchronous>, transform_indices = @transform_2, window_bounds = array<i64: 1, 128>}, {transform_indices = @transform_3, window_bounds = array<i64: 8, 128>}]} {
    %c0 = arith.constant 0 : index
    %c0_0 = arith.constant 0 : index
    %0 = vector.load %arg1[%c0, %c0_0] : memref<8x8xf32, #tpu.memory_space<vmem>>, vector<8x8xf32>
    %c0_1 = arith.constant 0 : index
    %c0_2 = arith.constant 0 : index
    %c0_3 = arith.constant 0 : index
    %1 = vector.load %arg2[%c0_1, %c0_2, %c0_3] : memref<2x8x128xf32, #tpu.memory_space<vmem>>, vector<1x8x128xf32>
    %2 = vector.shape_cast %1 : vector<1x8x128xf32> to vector<8x128xf32>
    %cst = arith.constant dense<0.000000e+00> : vector<8x128xf32>
    %3 = tpu.matmul %0, %2, %cst {dimension_numbers = #tpu.dot_dimension_numbers<[1], [0], [0], [1], [0, 0, 1, 1], [], []>, precision = #tpu.contract_precision<fp32>} : vector<8x8xf32>, vector<8x128xf32>, vector<8x128xf32> -> vector<8x128xf32>
    %c1 = arith.constant 1 : index
    %c0_4 = arith.constant 0 : index
    %c0_5 = arith.constant 0 : index
    %4 = vector.load %arg2[%c1, %c0_4, %c0_5] : memref<2x8x128xf32, #tpu.memory_space<vmem>>, vector<1x8x128xf32>
    %5 = vector.shape_cast %4 : vector<1x8x128xf32> to vector<8x128xf32>
    %cst_6 = arith.constant dense<0.000000e+00> : vector<8x128xf32>
    %6 = tpu.matmul %0, %5, %cst_6 {dimension_numbers = #tpu.dot_dimension_numbers<[1], [0], [0], [1], [0, 0, 1, 1], [], []>, precision = #tpu.contract_precision<fp32>} : vector<8x8xf32>, vector<8x128xf32>, vector<8x128xf32> -> vector<8x128xf32>
    %c0_7 = arith.constant 0 : index
    %c0_8 = arith.constant 0 : index
    %7 = vector.load %arg3[%c0_7, %c0_8] : memref<1x128xf32, #tpu.memory_space<vmem>>, vector<1x128xf32>
    %8 = math.sin %3 : vector<8x128xf32>
    %9 = vector.broadcast %7 : vector<1x128xf32> to vector<8x128xf32>
    %10 = arith.mulf %9, %8 : vector<8x128xf32>
    %11 = arith.addf %6, %10 : vector<8x128xf32>
    %c0_9 = arith.constant 0 : index
    %c0_10 = arith.constant 0 : index
    %12 = vector.load %arg4[%c0_9, %c0_10] : memref<8x128xf32, #tpu.memory_space<vmem>>, vector<8x128xf32>
    tpu.vector_store %arg4[%c0_9, %c0_10], %11 {strides = array<i32>} : memref<8x128xf32, #tpu.memory_space<vmem>>, vector<8x128xf32>,
    return
  }
  func.func @transform_0(%arg0: i32) -> (i32, i32) {
    %c0_i32 = arith.constant 0 : i32
    %c0_i32_0 = arith.constant 0 : i32
    return %arg0, %c0_i32 : i32, i32
  }
  func.func @transform_1(%arg0: i32) -> (i32, i32, i32) {
    %c0_i32 = arith.constant 0 : i32
    %c0_i32_0 = arith.constant 0 : i32
    %c0_i32_1 = arith.constant 0 : i32
    %c0_i32_2 = arith.constant 0 : i32
    return %c0_i32, %c0_i32_0, %c0_i32_1 : i32, i32, i32
  }
  func.func @transform_2(%arg0: i32) -> (i32, i32) {
    %c0_i32 = arith.constant 0 : i32
    %c0_i32_0 = arith.constant 0 : i32
    %c0_i32_1 = arith.constant 0 : i32
    return %c0_i32, %c0_i32_0 : i32, i32
  }
  func.func @transform_3(%arg0: i32) -> (i32, i32) {
    %c0_i32 = arith.constant 0 : i32
    %c0_i32_0 = arith.constant 0 : i32
    return %arg0, %c0_i32 : i32, i32
  }
}

</mosaic_0001>

<llo_original>
// kernel: tpu_custom_call.1
$region0: #{tpu_custom_call.1}
  #allocation0 [shape = 'u32[]', space=smem, size = 0x4, offset = 0x4, fixed_abs, tag = 'smem constant byte address 0x4 - core index']
  #allocation1 [shape = 'u32[144,128]{1,0:T(1,128)}', space=vmem, size = 0x12000, scoped, tag = 'internal scratch']
  %s0 = inlined_call_operand.hbm [shape: f32[8,8], index: 0, kind: input, shape index: {}]
  %s1 = inlined_call_operand.hbm [shape: f32[2,8,128], index: 1, kind: input, shape index: {}]
  %s2 = inlined_call_operand.vmem [shape: f32[1,128], index: 2, kind: input, shape index: {}]
  %s3 = inlined_call_operand.hbm [shape: f32[8,128], index: 3, kind: output, shape index: {}]
  %s4 = sld [smem:[#allocation0]]
  $region30: #{tpu_custom_call.1} parent=0
    _
  %s6 = ssub.s32 1, %s4
  %s7 = scalar_select 0, %s6, %s4
  $region1: #{tpu_custom_call.1} parent=0
    #allocation2 [shape = 'u8[4096]{0}', space=vmem, size = 0x1000, scoped, tag = 'input window, operand 0, single buffered']
    #allocation3 [shape = 's32[1]{0}', space=sflag, size = 0x4, scoped, tag = 'scoped memory for tpu_custom_call.1']
    #allocation4 [shape = 's32[1]{0}', space=sflag, size = 0x4, scoped, tag = 'scoped memory for tpu_custom_call.1']
    #allocation5 [shape = 'u8[8192]{0}', space=vmem, size = 0x2000, scoped, tag = 'input window, operand 1, single buffered']
    #allocation6 [shape = 's32[1]{0}', space=sflag, size = 0x4, scoped, tag = 'scoped memory for tpu_custom_call.1']
    #allocation7 [shape = 'u8[4096]{0}', space=vmem, size = 0x1000, scoped, tag = 'output window, operand 0, single buffered']
    %8 = vsyncpa [#allocation3], 0
    %9 = vsyncpa [#allocation6], 0
    %10 = vsyncpa [#allocation4], 0
    // Predicated region
    $region2: #{tpu_custom_call.1} parent=1 // pred_check
      _
    $region3: #{tpu_custom_call.1} parent=1 // pred_check_branch
      %12 = sbr.rel (0) target = $region5
    $region4: #{tpu_custom_call.1} parent=1 // pred_region
      %s14 = ssub.s32 128, 128
      %15 = vsyncadd [#allocation3], %s14
      %s17 = sshll.u32 [#allocation2], 4
      %s18 = int_to_ptr.vmem [resolvable:$true] %s17
      %20 = dma.hbm_to_vmem [thread:$0]  %s0, 128, %s18, [#allocation3]
    $region5: #{tpu_custom_call.1} parent=1 // pred_fallthru
      _
    // Predicated region
    $region6: #{tpu_custom_call.1} parent=1 // pred_check
      _
    $region7: #{tpu_custom_call.1} parent=1 // pred_check_branch
      %22 = sbr.rel (0) target = $region9
    $region8: #{tpu_custom_call.1} parent=1 // pred_region
      %s24 = ssub.s32 256, 256
      %25 = vsyncadd [#allocation6], %s24
      %s26 = sshll.u32 [#allocation5], 4
      %s27 = int_to_ptr.vmem [resolvable:$true] %s26
      %32 = dma.hbm_to_vmem [thread:$0]  %s1, 256, %s27, [#allocation6], 128, 128, 8
    $region9: #{tpu_custom_call.1} parent=1 // pred_fallthru
      _
    // Predicated region
    $region10: #{tpu_custom_call.1} parent=1 // pred_check
      _
    $region11: #{tpu_custom_call.1} parent=1 // pred_check_branch
      %34 = sbr.rel (0) target = $region13
    $region12: #{tpu_custom_call.1} parent=1 // pred_region
      _
    $region13: #{tpu_custom_call.1} parent=1 // pred_fallthru
      _
    // Predicated region
    $region14: #{tpu_custom_call.1} parent=1 // pred_check
      _
    $region15: #{tpu_custom_call.1} parent=1 // pred_check_branch
      %36 = sbr.rel (0) target = $region17
    $region16: #{tpu_custom_call.1} parent=1 // pred_region
      %37 = dma.done [#allocation3], 128
    $region17: #{tpu_custom_call.1} parent=1 // pred_fallthru
      _
    // Predicated region
    $region18: #{tpu_custom_call.1} parent=1 // pred_check
      _
    $region19: #{tpu_custom_call.1} parent=1 // pred_check_branch
      %39 = sbr.rel (0) target = $region21
    $region20: #{tpu_custom_call.1} parent=1 // pred_region
      %40 = dma.done [#allocation6], 256
    $region21: #{tpu_custom_call.1} parent=1 // pred_fallthru
      _
    %v41 = vld [vmem:[#allocation2] sm:$0xff]
    %v42 = vld [vmem:[#allocation5] sm:$0xff]
    %vm43 = vcmask 64512
    %v45 = vsel %vm43, %v41, 0
    %47 = vmatprep.subr.mxu0 0.0
    %v48 = vand.u32 %v42, 4294901760
    %49 = vmatpush1.msra.mxu0 %v48
    %50 = vmatprep.subr.mxu0 0.0
    %51 = vmatpush1.msra.mxu0 0.0
    %52 = vmatprep.subr.mxu0 0.0
    %53 = vmatpush1.msra.mxu0 0.0
    %54 = vmatprep.subr.mxu0 0.0
    %55 = vmatpush1.msra.mxu0 0.0
    %56 = vmatprep.subr.mxu0 0.0
    %57 = vmatpush1.msra.mxu0 0.0
    %58 = vmatprep.subr.mxu0 0.0
    %59 = vmatpush1.msra.mxu0 0.0
    %60 = vmatprep.subr.mxu0 0.0
    %61 = vmatpush1.msra.mxu0 0.0
    %62 = vmatprep.subr.mxu0 0.0
    %63 = vmatpush1.msra.mxu0 0.0
    %64 = vmatprep.subr.mxu0 0.0
    %65 = vmatpush1.msra.mxu0 0.0
    %66 = vmatprep.subr.mxu0 0.0
    %67 = vmatpush1.msra.mxu0 0.0
    %68 = vmatprep.subr.mxu0 0.0
    %69 = vmatpush1.msra.mxu0 0.0
    %70 = vmatprep.subr.mxu0 0.0
    %71 = vmatpush1.msra.mxu0 0.0
    %72 = vmatprep.subr.mxu0 0.0
    %73 = vmatpush1.msra.mxu0 0.0
    %74 = vmatprep.subr.mxu0 0.0
    %75 = vmatpush1.msra.mxu0 0.0
    %76 = vmatprep.subr.mxu0 0.0
    %77 = vmatpush1.msra.mxu0 0.0
    %78 = vmatprep.subr.mxu0 0.0
    %79 = vmatpush1.msra.mxu0 0.0
    %80 = vmatprep.subr.mxu0 0.0
    %81 = vmatpush1.msra.mxu0 0.0
    %82 = vmatprep.subr.mxu0 0.0
    %83 = vmatpush1.msra.mxu0 0.0
    %84 = vmatprep.subr.mxu0 0.0
    %85 = vmatpush1.msra.mxu0 0.0
    %86 = vmatprep.subr.mxu0 0.0
    %87 = vmatpush1.msra.mxu0 0.0
    %88 = vmatprep.subr.mxu0 0.0
    %89 = vmatpush1.msra.mxu0 0.0
    %90 = vmatprep.subr.mxu0 0.0
    %91 = vmatpush1.msra.mxu0 0.0
    %92 = vmatprep.subr.mxu0 0.0
    %93 = vmatpush1.msra.mxu0 0.0
    %94 = vmatprep.subr.mxu0 0.0
    %95 = vmatpush1.msra.mxu0 0.0
    %96 = vmatprep.subr.mxu0 0.0
    %97 = vmatpush1.msra.mxu0 0.0
    %98 = vmatprep.subr.mxu0 0.0
    %99 = vmatpush1.msra.mxu0 0.0
    %100 = vmatprep.subr.mxu0 0.0
    %101 = vmatpush1.msra.mxu0 0.0
    %102 = vmatprep.subr.mxu0 0.0
    %103 = vmatpush1.msra.mxu0 0.0
    %104 = vmatprep.subr.mxu0 0.0
    %105 = vmatpush1.msra.mxu0 0.0
    %106 = vmatprep.subr.mxu0 0.0
    %107 = vmatpush1.msra.mxu0 0.0
    %108 = vmatprep.subr.mxu0 0.0
    %109 = vmatpush1.msra.mxu0 0.0
    %110 = vmatprep.subr.mxu0 0.0
    %111 = vmatpush1.msra.mxu0 0.0
    %112 = vmatprep.mubr.f32.mxu0 0.0
    %v113 = vand.u32 %v45, 4294901760
    %v114 = vsub.f32 %v45, %v113
    %v115 = vand.u32 %v114, 4294901760
    %v116 = vsub.f32 %v114, %v115
    %v117 = vand.u32 %v116, 4294901760
    %118 = vmatmul.mubr.f32.gmra.mrb[0].mxu0 %v117
    %v119 = vpop.f32.mrb[0].mxu0
    %v120 = vadd.f32 0.0, %v119
    %v121 = vpop.f32.mrb[0].mxu0
    %122 = vdwg.mxu0
    %123 = vmatprep.subr.mxu0 0.0
    %v124 = vand.u32 %v42, 4294901760
    %v125 = vsub.f32 %v42, %v124
    %v126 = vand.u32 %v125, 4294901760
    %v127 = vsub.f32 %v125, %v126
    %v128 = vand.u32 %v127, 4294901760
    %129 = vmatpush1.msra.mxu0 %v128
    %130 = vmatprep.subr.mxu0 0.0
    %131 = vmatpush1.msra.mxu0 0.0
    %132 = vmatprep.subr.mxu0 0.0
    %133 = vmatpush1.msra.mxu0 0.0
    %134 = vmatprep.subr.mxu0 0.0
    %135 = vmatpush1.msra.mxu0 0.0
    %136 = vmatprep.subr.mxu0 0.0
    %137 = vmatpush1.msra.mxu0 0.0
    %138 = vmatprep.subr.mxu0 0.0
    %139 = vmatpush1.msra.mxu0 0.0
    %140 = vmatprep.subr.mxu0 0.0
    %141 = vmatpush1.msra.mxu0 0.0
    %142 = vmatprep.subr.mxu0 0.0
    %143 = vmatpush1.msra.mxu0 0.0
    %144 = vmatprep.subr.mxu0 0.0
    %145 = vmatpush1.msra.mxu0 0.0
    %146 = vmatprep.subr.mxu0 0.0
    %147 = vmatpush1.msra.mxu0 0.0
    %148 = vmatprep.subr.mxu0 0.0
    %149 = vmatpush1.msra.mxu0 0.0
    %150 = vmatprep.subr.mxu0 0.0
    %151 = vmatpush1.msra.mxu0 0.0
    %152 = vmatprep.subr.mxu0 0.0
    %153 = vmatpush1.msra.mxu0 0.0
    %154 = vmatprep.subr.mxu0 0.0
    %155 = vmatpush1.msra.mxu0 0.0
    %156 = vmatprep.subr.mxu0 0.0
    %157 = vmatpush1.msra.mxu0 0.0
    %158 = vmatprep.subr.mxu0 0.0
    %159 = vmatpush1.msra.mxu0 0.0
    %160 = vmatprep.subr.mxu0 0.0
    %161 = vmatpush1.msra.mxu0 0.0
    %162 = vmatprep.subr.mxu0 0.0
    %163 = vmatpush1.msra.mxu0 0.0
    %164 = vmatprep.subr.mxu0 0.0
    %165 = vmatpush1.msra.mxu0 0.0
    %166 = vmatprep.subr.mxu0 0.0
    %167 = vmatpush1.msra.mxu0 0.0
    %168 = vmatprep.subr.mxu0 0.0
    %169 = vmatpush1.msra.mxu0 0.0
    %170 = vmatprep.subr.mxu0 0.0
    %171 = vmatpush1.msra.mxu0 0.0
    %172 = vmatprep.subr.mxu0 0.0
    %173 = vmatpush1.msra.mxu0 0.0
    %174 = vmatprep.subr.mxu0 0.0
    %175 = vmatpush1.msra.mxu0 0.0
    %176 = vmatprep.subr.mxu0 0.0
    %177 = vmatpush1.msra.mxu0 0.0
    %178 = vmatprep.subr.mxu0 0.0
    %179 = vmatpush1.msra.mxu0 0.0
    %180 = vmatprep.subr.mxu0 0.0
    %181 = vmatpush1.msra.mxu0 0.0
    %182 = vmatprep.subr.mxu0 0.0
    %183 = vmatpush1.msra.mxu0 0.0
    %184 = vmatprep.subr.mxu0 0.0
    %185 = vmatpush1.msra.mxu0 0.0
    %186 = vmatprep.subr.mxu0 0.0
    %187 = vmatpush1.msra.mxu0 0.0
    %188 = vmatprep.subr.mxu0 0.0
    %189 = vmatpush1.msra.mxu0 0.0
    %190 = vmatprep.subr.mxu0 0.0
    %191 = vmatpush1.msra.mxu0 0.0
    %192 = vmatprep.mubr.f32.mxu0 0.0
    %v193 = vand.u32 %v45, 4294901760
    %194 = vmatmul.mubr.f32.gmra.mrb[0].mxu0 %v193
    %v195 = vpop.f32.mrb[0].mxu0
    %v196 = vadd.f32 %v120, %v195
    %v197 = vpop.f32.mrb[0].mxu0
    %198 = vdwg.mxu0
    %199 = vmatprep.subr.mxu0 0.0
    %v200 = vand.u32 %v42, 4294901760
    %v201 = vsub.f32 %v42, %v200
    %202 = vmatpush1.msra.mxu0 %v201
    %203 = vmatprep.subr.mxu0 0.0
    %204 = vmatpush1.msra.mxu0 0.0
    %205 = vmatprep.subr.mxu0 0.0
    %206 = vmatpush1.msra.mxu0 0.0
    %207 = vmatprep.subr.mxu0 0.0
    %208 = vmatpush1.msra.mxu0 0.0
    %209 = vmatprep.subr.mxu0 0.0
    %210 = vmatpush1.msra.mxu0 0.0
    %211 = vmatprep.subr.mxu0 0.0
    %212 = vmatpush1.msra.mxu0 0.0
    %213 = vmatprep.subr.mxu0 0.0
    %214 = vmatpush1.msra.mxu0 0.0
    %215 = vmatprep.subr.mxu0 0.0
    %216 = vmatpush1.msra.mxu0 0.0
    %217 = vmatprep.subr.mxu0 0.0
    %218 = vmatpush1.msra.mxu0 0.0
    %219 = vmatprep.subr.mxu0 0.0
    %220 = vmatpush1.msra.mxu0 0.0
    %221 = vmatprep.subr.mxu0 0.0
    %222 = vmatpush1.msra.mxu0 0.0
    %223 = vmatprep.subr.mxu0 0.0
    %224 = vmatpush1.msra.mxu0 0.0
    %225 = vmatprep.subr.mxu0 0.0
    %226 = vmatpush1.msra.mxu0 0.0
    %227 = vmatprep.subr.mxu0 0.0
    %228 = vmatpush1.msra.mxu0 0.0
    %229 = vmatprep.subr.mxu0 0.0
    %230 = vmatpush1.msra.mxu0 0.0
    %231 = vmatprep.subr.mxu0 0.0
    %232 = vmatpush1.msra.mxu0 0.0
    %233 = vmatprep.subr.mxu0 0.0
    %234 = vmatpush1.msra.mxu0 0.0
    %235 = vmatprep.subr.mxu0 0.0
    %236 = vmatpush1.msra.mxu0 0.0
    %237 = vmatprep.subr.mxu0 0.0
    %238 = vmatpush1.msra.mxu0 0.0
    %239 = vmatprep.subr.mxu0 0.0
    %240 = vmatpush1.msra.mxu0 0.0
    %241 = vmatprep.subr.mxu0 0.0
    %242 = vmatpush1.msra.mxu0 0.0
    %243 = vmatprep.subr.mxu0 0.0
    %244 = vmatpush1.msra.mxu0 0.0
    %245 = vmatprep.subr.mxu0 0.0
    %246 = vmatpush1.msra.mxu0 0.0
    %247 = vmatprep.subr.mxu0 0.0
    %248 = vmatpush1.msra.mxu0 0.0
    %249 = vmatprep.subr.mxu0 0.0
    %250 = vmatpush1.msra.mxu0 0.0
    %251 = vmatprep.subr.mxu0 0.0
    %252 = vmatpush1.msra.mxu0 0.0
    %253 = vmatprep.subr.mxu0 0.0
    %254 = vmatpush1.msra.mxu0 0.0
    %255 = vmatprep.subr.mxu0 0.0
    %256 = vmatpush1.msra.mxu0 0.0
    %257 = vmatprep.subr.mxu0 0.0
    %258 = vmatpush1.msra.mxu0 0.0
    %259 = vmatprep.subr.mxu0 0.0
    %260 = vmatpush1.msra.mxu0 0.0
    %261 = vmatprep.subr.mxu0 0.0
    %262 = vmatpush1.msra.mxu0 0.0
    %263 = vmatprep.subr.mxu0 0.0
    %264 = vmatpush1.msra.mxu0 0.0
    %265 = vmatprep.mubr.f32.mxu0 0.0
    %v266 = vand.u32 %v45, 4294901760
    %v267 = vsub.f32 %v45, %v266
    %268 = vmatmul.mubr.f32.gmra.mrb[0].mxu0 %v267
    %v269 = vpop.f32.mrb[0].mxu0
    %v270 = vadd.f32 %v196, %v269
    %v271 = vpop.f32.mrb[0].mxu0
    %272 = vdwg.mxu0
    %273 = vmatprep.subr.mxu0 0.0
    %v274 = vand.u32 %v42, 4294901760
    %275 = vmatpush1.msra.mxu0 %v274
    %276 = vmatprep.subr.mxu0 0.0
    %277 = vmatpush1.msra.mxu0 0.0
    %278 = vmatprep.subr.mxu0 0.0
    %279 = vmatpush1.msra.mxu0 0.0
    %280 = vmatprep.subr.mxu0 0.0
    %281 = vmatpush1.msra.mxu0 0.0
    %282 = vmatprep.subr.mxu0 0.0
    %283 = vmatpush1.msra.mxu0 0.0
    %284 = vmatprep.subr.mxu0 0.0
    %285 = vmatpush1.msra.mxu0 0.0
    %286 = vmatprep.subr.mxu0 0.0
    %287 = vmatpush1.msra.mxu0 0.0
    %288 = vmatprep.subr.mxu0 0.0
    %289 = vmatpush1.msra.mxu0 0.0
    %290 = vmatprep.subr.mxu0 0.0
    %291 = vmatpush1.msra.mxu0 0.0
    %292 = vmatprep.subr.mxu0 0.0
    %293 = vmatpush1.msra.mxu0 0.0
    %294 = vmatprep.subr.mxu0 0.0
    %295 = vmatpush1.msra.mxu0 0.0
    %296 = vmatprep.subr.mxu0 0.0
    %297 = vmatpush1.msra.mxu0 0.0
    %298 = vmatprep.subr.mxu0 0.0
    %299 = vmatpush1.msra.mxu0 0.0
    %300 = vmatprep.subr.mxu0 0.0
    %301 = vmatpush1.msra.mxu0 0.0
    %302 = vmatprep.subr.mxu0 0.0
    %303 = vmatpush1.msra.mxu0 0.0
    %304 = vmatprep.subr.mxu0 0.0
    %305 = vmatpush1.msra.mxu0 0.0
    %306 = vmatprep.subr.mxu0 0.0
    %307 = vmatpush1.msra.mxu0 0.0
    %308 = vmatprep.subr.mxu0 0.0
    %309 = vmatpush1.msra.mxu0 0.0
    %310 = vmatprep.subr.mxu0 0.0
    %311 = vmatpush1.msra.mxu0 0.0
    %312 = vmatprep.subr.mxu0 0.0
    %313 = vmatpush1.msra.mxu0 0.0
    %314 = vmatprep.subr.mxu0 0.0
    %315 = vmatpush1.msra.mxu0 0.0
    %316 = vmatprep.subr.mxu0 0.0
    %317 = vmatpush1.msra.mxu0 0.0
    %318 = vmatprep.subr.mxu0 0.0
    %319 = vmatpush1.msra.mxu0 0.0
    %320 = vmatprep.subr.mxu0 0.0
    %321 = vmatpush1.msra.mxu0 0.0
    %322 = vmatprep.subr.mxu0 0.0
    %323 = vmatpush1.msra.mxu0 0.0
    %324 = vmatprep.subr.mxu0 0.0
    %325 = vmatpush1.msra.mxu0 0.0
    %326 = vmatprep.subr.mxu0 0.0
    %327 = vmatpush1.msra.mxu0 0.0
    %328 = vmatprep.subr.mxu0 0.0
    %329 = vmatpush1.msra.mxu0 0.0
    %330 = vmatprep.subr.mxu0 0.0
    %331 = vmatpush1.msra.mxu0 0.0
    %332 = vmatprep.subr.mxu0 0.0
    %333 = vmatpush1.msra.mxu0 0.0
    %334 = vmatprep.subr.mxu0 0.0
    %335 = vmatpush1.msra.mxu0 0.0
    %336 = vmatprep.subr.mxu0 0.0
    %337 = vmatpush1.msra.mxu0 0.0
    %338 = vmatprep.mubr.f32.mxu0 0.0
    %v339 = vand.u32 %v45, 4294901760
    %v340 = vsub.f32 %v45, %v339
    %v341 = vand.u32 %v340, 4294901760
    %342 = vmatmul.mubr.f32.gmra.mrb[0].mxu0 %v341
    %v343 = vpop.f32.mrb[0].mxu0
    %v344 = vadd.f32 %v270, %v343
    %v345 = vpop.f32.mrb[0].mxu0
    %346 = vdwg.mxu0
    %347 = vmatprep.subr.mxu0 0.0
    %v348 = vand.u32 %v42, 4294901760
    %v349 = vsub.f32 %v42, %v348
    %v350 = vand.u32 %v349, 4294901760
    %351 = vmatpush1.msra.mxu0 %v350
    %352 = vmatprep.subr.mxu0 0.0
    %353 = vmatpush1.msra.mxu0 0.0
    %354 = vmatprep.subr.mxu0 0.0
    %355 = vmatpush1.msra.mxu0 0.0
    %356 = vmatprep.subr.mxu0 0.0
    %357 = vmatpush1.msra.mxu0 0.0
    %358 = vmatprep.subr.mxu0 0.0
    %359 = vmatpush1.msra.mxu0 0.0
    %360 = vmatprep.subr.mxu0 0.0
    %361 = vmatpush1.msra.mxu0 0.0
    %362 = vmatprep.subr.mxu0 0.0
    %363 = vmatpush1.msra.mxu0 0.0
    %364 = vmatprep.subr.mxu0 0.0
    %365 = vmatpush1.msra.mxu0 0.0
    %366 = vmatprep.subr.mxu0 0.0
    %367 = vmatpush1.msra.mxu0 0.0
    %368 = vmatprep.subr.mxu0 0.0
    %369 = vmatpush1.msra.mxu0 0.0
    %370 = vmatprep.subr.mxu0 0.0
    %371 = vmatpush1.msra.mxu0 0.0
    %372 = vmatprep.subr.mxu0 0.0
    %373 = vmatpush1.msra.mxu0 0.0
    %374 = vmatprep.subr.mxu0 0.0
    %375 = vmatpush1.msra.mxu0 0.0
    %376 = vmatprep.subr.mxu0 0.0
    %377 = vmatpush1.msra.mxu0 0.0
    %378 = vmatprep.subr.mxu0 0.0
    %379 = vmatpush1.msra.mxu0 0.0
    %380 = vmatprep.subr.mxu0 0.0
    %381 = vmatpush1.msra.mxu0 0.0
    %382 = vmatprep.subr.mxu0 0.0
    %383 = vmatpush1.msra.mxu0 0.0
    %384 = vmatprep.subr.mxu0 0.0
    %385 = vmatpush1.msra.mxu0 0.0
    %386 = vmatprep.subr.mxu0 0.0
    %387 = vmatpush1.msra.mxu0 0.0
    %388 = vmatprep.subr.mxu0 0.0
    %389 = vmatpush1.msra.mxu0 0.0
    %390 = vmatprep.subr.mxu0 0.0
    %391 = vmatpush1.msra.mxu0 0.0
    %392 = vmatprep.subr.mxu0 0.0
    %393 = vmatpush1.msra.mxu0 0.0
    %394 = vmatprep.subr.mxu0 0.0
    %395 = vmatpush1.msra.mxu0 0.0
    %396 = vmatprep.subr.mxu0 0.0
    %397 = vmatpush1.msra.mxu0 0.0
    %398 = vmatprep.subr.mxu0 0.0
    %399 = vmatpush1.msra.mxu0 0.0
    %400 = vmatprep.subr.mxu0 0.0
    %401 = vmatpush1.msra.mxu0 0.0
    %402 = vmatprep.subr.mxu0 0.0
    %403 = vmatpush1.msra.mxu0 0.0
    %404 = vmatprep.subr.mxu0 0.0
    %405 = vmatpush1.msra.mxu0 0.0
    %406 = vmatprep.subr.mxu0 0.0
    %407 = vmatpush1.msra.mxu0 0.0
    %408 = vmatprep.subr.mxu0 0.0
    %409 = vmatpush1.msra.mxu0 0.0
    %410 = vmatprep.subr.mxu0 0.0
    %411 = vmatpush1.msra.mxu0 0.0
    %412 = vmatprep.subr.mxu0 0.0
    %413 = vmatpush1.msra.mxu0 0.0
    %414 = vmatprep.mubr.f32.mxu0 0.0
    %v415 = vand.u32 %v45, 4294901760
    %416 = vmatmul.mubr.f32.gmra.mrb[0].mxu0 %v415
    %v417 = vpop.f32.mrb[0].mxu0
    %v418 = vadd.f32 %v344, %v417
    %v419 = vpop.f32.mrb[0].mxu0
    %420 = vdwg.mxu0
    %421 = vmatprep.subr.mxu0 0.0
    %v422 = vand.u32 %v42, 4294901760
    %423 = vmatpush1.msra.mxu0 %v422
    %424 = vmatprep.subr.mxu0 0.0
    %425 = vmatpush1.msra.mxu0 0.0
    %426 = vmatprep.subr.mxu0 0.0
    %427 = vmatpush1.msra.mxu0 0.0
    %428 = vmatprep.subr.mxu0 0.0
    %429 = vmatpush1.msra.mxu0 0.0
    %430 = vmatprep.subr.mxu0 0.0
    %431 = vmatpush1.msra.mxu0 0.0
    %432 = vmatprep.subr.mxu0 0.0
    %433 = vmatpush1.msra.mxu0 0.0
    %434 = vmatprep.subr.mxu0 0.0
    %435 = vmatpush1.msra.mxu0 0.0
    %436 = vmatprep.subr.mxu0 0.0
    %437 = vmatpush1.msra.mxu0 0.0
    %438 = vmatprep.subr.mxu0 0.0
    %439 = vmatpush1.msra.mxu0 0.0
    %440 = vmatprep.subr.mxu0 0.0
    %441 = vmatpush1.msra.mxu0 0.0
    %442 = vmatprep.subr.mxu0 0.0
    %443 = vmatpush1.msra.mxu0 0.0
    %444 = vmatprep.subr.mxu0 0.0
    %445 = vmatpush1.msra.mxu0 0.0
    %446 = vmatprep.subr.mxu0 0.0
    %447 = vmatpush1.msra.mxu0 0.0
    %448 = vmatprep.subr.mxu0 0.0
    %449 = vmatpush1.msra.mxu0 0.0
    %450 = vmatprep.subr.mxu0 0.0
    %451 = vmatpush1.msra.mxu0 0.0
    %452 = vmatprep.subr.mxu0 0.0
    %453 = vmatpush1.msra.mxu0 0.0
    %454 = vmatprep.subr.mxu0 0.0
    %455 = vmatpush1.msra.mxu0 0.0
    %456 = vmatprep.subr.mxu0 0.0
    %457 = vmatpush1.msra.mxu0 0.0
    %458 = vmatprep.subr.mxu0 0.0
    %459 = vmatpush1.msra.mxu0 0.0
    %460 = vmatprep.subr.mxu0 0.0
    %461 = vmatpush1.msra.mxu0 0.0
    %462 = vmatprep.subr.mxu0 0.0
    %463 = vmatpush1.msra.mxu0 0.0
    %464 = vmatprep.subr.mxu0 0.0
    %465 = vmatpush1.msra.mxu0 0.0
    %466 = vmatprep.subr.mxu0 0.0
    %467 = vmatpush1.msra.mxu0 0.0
    %468 = vmatprep.subr.mxu0 0.0
    %469 = vmatpush1.msra.mxu0 0.0
    %470 = vmatprep.subr.mxu0 0.0
    %471 = vmatpush1.msra.mxu0 0.0
    %472 = vmatprep.subr.mxu0 0.0
    %473 = vmatpush1.msra.mxu0 0.0
    %474 = vmatprep.subr.mxu0 0.0
    %475 = vmatpush1.msra.mxu0 0.0
    %476 = vmatprep.subr.mxu0 0.0
    %477 = vmatpush1.msra.mxu0 0.0
    %478 = vmatprep.subr.mxu0 0.0
    %479 = vmatpush1.msra.mxu0 0.0
    %480 = vmatprep.subr.mxu0 0.0
    %481 = vmatpush1.msra.mxu0 0.0
    %482 = vmatprep.subr.mxu0 0.0
    %483 = vmatpush1.msra.mxu0 0.0
    %484 = vmatprep.subr.mxu0 0.0
    %485 = vmatpush1.msra.mxu0 0.0
    %486 = vmatprep.mubr.f32.mxu0 0.0
    %v487 = vand.u32 %v45, 4294901760
    %488 = vmatmul.mubr.f32.gmra.mrb[0].mxu0 %v487
    %v489 = vpop.f32.mrb[0].mxu0
    %v490 = vadd.f32 %v418, %v489
    %v491 = vpop.f32.mrb[0].mxu0
    %492 = vdwg.mxu0
    %s493 = scalar_lea.vmem [#allocation5], 8
    %v494 = vld [vmem:[%s493] sm:$0xff]
    %v495 = vld [vmem:[%s2] sm:$0x1]
    %v496 = vand.u32 2147483647, %v490
    %vm497 = vcmp.le.f32.partialorder %v496, 0.7853982
    %vm498 = vcmp.lt.s32.totalorder %v490, 0
    %v499 = vand.u32 %v490, 2139095040
    %v500 = vshrl.u32 %v499, 23
    %v501 = vsub.s32 %v500, 127
    %v502 = vand.u32 2147483647, %v490
    %v503 = vand.u32 %v502, 8388607
    %v504 = vor.u32 %v503, 8388608
    %v505 = vsub.s32 0, %v504
    %v506 = vadd.s32 %v501, 1
    %vm507 = vcmp.gt.s32.totalorder %v506, 0
    %v508 = vsel %vm507, %v506, 0
    %v509 = vshrl.u32 %v508, 5
    %v510 = vand.u32 %v508, 31
    %v511 = vsub.s32 32, %v510
    %v512 = vshrl.u32 683565275, %v511
    %v513 = vshll.u32 683565275, %v510
    %v514 = vshrl.u32 2475754826, %v511
    %v515 = vor.u32 %v513, %v514
    %v516 = vshll.u32 2475754826, %v510
    %v517 = vshrl.u32 2131351028, %v511
    %v518 = vor.u32 %v516, %v517
    %v519 = vshll.u32 2131351028, %v510
    %v520 = vshrl.u32 2102212464, %v511
    %v521 = vor.u32 %v519, %v520
    %v522 = vshll.u32 2102212464, %v510
    %v523 = vshrl.u32 920167782, %v511
    %v524 = vor.u32 %v522, %v523
    %v525 = vshll.u32 920167782, %v510
    %v526 = vshrl.u32 1326507024, %v511
    %v527 = vor.u32 %v525, %v526
    %vm528 = vcmp.lt.s32.totalorder %v509, 1
    %vm529 = vcmp.lt.s32.totalorder %v509, 2
    %vm530 = vcmp.lt.s32.totalorder %v509, 3
    %vm531 = vcmp.lt.s32.totalorder %v509, 4
    %v532 = vsel %vm528, %v512, %v515
    %v533 = vsel %vm531, %v521, 2102212464
    %v534 = vsel %vm530, %v518, %v533
    %v535 = vsel %vm529, %v532, %v534
    %v536 = vsel %vm528, %v515, %v518
    %v537 = vsel %vm531, %v524, 920167782
    %v538 = vsel %vm530, %v521, %v537
    %v539 = vsel %vm529, %v536, %v538
    %v540 = vsel %vm528, %v518, %v521
    %v541 = vsel %vm531, %v527, 1326507024
    %v542 = vsel %vm530, %v524, %v541
    %v543 = vsel %vm529, %v540, %v542
    %v544 = vshll.u32 %v504, 8
    %v545 = vmul.u32.u64.compose %v544, %v543
    %v546 = vextract.low.u32 %v545
    %v547 = vextract.high.u32 %v545
    %v548 = vmul.u32.u64.compose %v544, %v539
    %v549 = vextract.low.u32 %v548
    %v550 = vextract.high.u32 %v548
    %v551 = vmul.u32 %v544, %v535
    %v552 = vadd.s32 %v547, %v549
    %vm553 = vc.u32 %v547, %v549
    %v554 = vadd.s32 %v550, 1
    %v555 = vsel %vm553, %v554, %v550
    %v556 = vadd.s32 %v551, %v555
    %v557 = vadd.s32 %v556, 536870912
    %v558 = vshrl.u32 %v557, 30
    %v559 = vshll.u32 %v558, 30
    %v560 = vsub.s32 %v556, %v559
    %vm561 = vcmp.lt.s32.totalorder %v560, 0
    %v562 = vsub.s32 0, %v560
    %v563 = vsel %vm561, %v562, %v560
    %v564 = vclz %v563
    %v565 = vsub.s32 %v564, 2
    %vm566 = vcmp.gt.s32.totalorder 0, %v565
    %v567 = vsel %vm566, 0, %v565
    %v568 = vsub.s32 32, %v567
    %v569 = vshll.u32 %v560, %v567
    %v570 = vshrl.u32 %v552, %v568
    %v571 = vor.u32 %v569, %v570
    %v572 = vsub.s32 4294967266, %v567
    %v573 = vadd.s32 %v572, 127
    %v574 = vshll.u32 %v573, 23
    %v575 = vor.u32 4788187, %v574
    %v576 = vand.u32 2147483647, %v575
    %v578 = vcvt.s32.f32 %v571
    %v579 = vmul.f32 %v578, %v576
    %v580 = vxor.u32 %v579, 2147483648
    %v581 = vsel %vm498, %v580, %v579
    %v582 = vsub.s32 4, %v558
    %v583 = vsel %vm498, %v582, %v558
    %v584 = vsel %vm497, %v490, %v581
    %v585 = vsel %vm497, 0, %v583
    %v586 = vcosq.f32.pop %v584
    %v587 = vsinq.f32.pop %v584
    %vm588 = vweird.f32 %v490
    %v589 = vadd.s32 %v585, 3
    %v590 = vand.u32 %v589, 3
    %vm591 = vcmp.lt.s32.totalorder %v590, 2
    %vm592 = vcmp.eq.s32.totalorder %v590, 0
    %v593 = vxor.u32 %v587, 2147483648
    %v594 = vsel %vm592, %v586, %v593
    %vm595 = vcmp.eq.s32.totalorder %v590, 2
    %v596 = vxor.u32 %v586, 2147483648
    %v597 = vsel %vm595, %v596, %v587
    %v598 = vsel %vm591, %v594, %v597
    %v599 = vsel %vm588, nan, %v598
    %v601 = vlaneseq
    %v602 = vshrl.u32 %v601, 7
    %v603 = vsub.s32 0, %v602
    %v604 = vrot.slane %v495, %v603
    %v606 = vmul.f32 %v604, %v599
    %607 = vmatprep.subr.mxu0 0.0
    %v608 = vand.u32 %v494, 4294901760
    %609 = vmatpush1.msra.mxu0 %v608
    %610 = vmatprep.subr.mxu0 0.0
    %611 = vmatpush1.msra.mxu0 0.0
    %612 = vmatprep.subr.mxu0 0.0
    %613 = vmatpush1.msra.mxu0 0.0
    %614 = vmatprep.subr.mxu0 0.0
    %615 = vmatpush1.msra.mxu0 0.0
    %616 = vmatprep.subr.mxu0 0.0
    %617 = vmatpush1.msra.mxu0 0.0
    %618 = vmatprep.subr.mxu0 0.0
    %619 = vmatpush1.msra.mxu0 0.0
    %620 = vmatprep.subr.mxu0 0.0
    %621 = vmatpush1.msra.mxu0 0.0
    %622 = vmatprep.subr.mxu0 0.0
    %623 = vmatpush1.msra.mxu0 0.0
    %624 = vmatprep.subr.mxu0 0.0
    %625 = vmatpush1.msra.mxu0 0.0
    %626 = vmatprep.subr.mxu0 0.0
    %627 = vmatpush1.msra.mxu0 0.0
    %628 = vmatprep.subr.mxu0 0.0
    %629 = vmatpush1.msra.mxu0 0.0
    %630 = vmatprep.subr.mxu0 0.0
    %631 = vmatpush1.msra.mxu0 0.0
    %632 = vmatprep.subr.mxu0 0.0
    %633 = vmatpush1.msra.mxu0 0.0
    %634 = vmatprep.subr.mxu0 0.0
    %635 = vmatpush1.msra.mxu0 0.0
    %636 = vmatprep.subr.mxu0 0.0
    %637 = vmatpush1.msra.mxu0 0.0
    %638 = vmatprep.subr.mxu0 0.0
    %639 = vmatpush1.msra.mxu0 0.0
    %640 = vmatprep.subr.mxu0 0.0
    %641 = vmatpush1.msra.mxu0 0.0
    %642 = vmatprep.subr.mxu0 0.0
    %643 = vmatpush1.msra.mxu0 0.0
    %644 = vmatprep.subr.mxu0 0.0
    %645 = vmatpush1.msra.mxu0 0.0
    %646 = vmatprep.subr.mxu0 0.0
    %647 = vmatpush1.msra.mxu0 0.0
    %648 = vmatprep.subr.mxu0 0.0
    %649 = vmatpush1.msra.mxu0 0.0
    %650 = vmatprep.subr.mxu0 0.0
    %651 = vmatpush1.msra.mxu0 0.0
    %652 = vmatprep.subr.mxu0 0.0
    %653 = vmatpush1.msra.mxu0 0.0
    %654 = vmatprep.subr.mxu0 0.0
    %655 = vmatpush1.msra.mxu0 0.0
    %656 = vmatprep.subr.mxu0 0.0
    %657 = vmatpush1.msra.mxu0 0.0
    %658 = vmatprep.subr.mxu0 0.0
    %659 = vmatpush1.msra.mxu0 0.0
    %660 = vmatprep.subr.mxu0 0.0
    %661 = vmatpush1.msra.mxu0 0.0
    %662 = vmatprep.subr.mxu0 0.0
    %663 = vmatpush1.msra.mxu0 0.0
    %664 = vmatprep.subr.mxu0 0.0
    %665 = vmatpush1.msra.mxu0 0.0
    %666 = vmatprep.subr.mxu0 0.0
    %667 = vmatpush1.msra.mxu0 0.0
    %668 = vmatprep.subr.mxu0 0.0
    %669 = vmatpush1.msra.mxu0 0.0
    %670 = vmatprep.subr.mxu0 0.0
    %671 = vmatpush1.msra.mxu0 0.0
    %672 = vmatprep.mubr.f32.mxu0 0.0
    %v673 = vand.u32 %v45, 4294901760
    %v674 = vsub.f32 %v45, %v673
    %v675 = vand.u32 %v674, 4294901760
    %v676 = vsub.f32 %v674, %v675
    %v677 = vand.u32 %v676, 4294901760
    %678 = vmatmul.mubr.f32.gmra.mrb[0].mxu0 %v677
    %v679 = vpop.f32.mrb[0].mxu0
    %v680 = vadd.f32 %v606, %v679
    %v681 = vpop.f32.mrb[0].mxu0
    %682 = vdwg.mxu0
    %683 = vmatprep.subr.mxu0 0.0
    %v684 = vand.u32 %v494, 4294901760
    %v685 = vsub.f32 %v494, %v684
    %v686 = vand.u32 %v685, 4294901760
    %v687 = vsub.f32 %v685, %v686
    %v688 = vand.u32 %v687, 4294901760
    %689 = vmatpush1.msra.mxu0 %v688
    %690 = vmatprep.subr.mxu0 0.0
    %691 = vmatpush1.msra.mxu0 0.0
    %692 = vmatprep.subr.mxu0 0.0
    %693 = vmatpush1.msra.mxu0 0.0
    %694 = vmatprep.subr.mxu0 0.0
    %695 = vmatpush1.msra.mxu0 0.0
    %696 = vmatprep.subr.mxu0 0.0
    %697 = vmatpush1.msra.mxu0 0.0
    %698 = vmatprep.subr.mxu0 0.0
    %699 = vmatpush1.msra.mxu0 0.0
    %700 = vmatprep.subr.mxu0 0.0
    %701 = vmatpush1.msra.mxu0 0.0
    %702 = vmatprep.subr.mxu0 0.0
    %703 = vmatpush1.msra.mxu0 0.0
    %704 = vmatprep.subr.mxu0 0.0
    %705 = vmatpush1.msra.mxu0 0.0
    %706 = vmatprep.subr.mxu0 0.0
    %707 = vmatpush1.msra.mxu0 0.0
    %708 = vmatprep.subr.mxu0 0.0
    %709 = vmatpush1.msra.mxu0 0.0
    %710 = vmatprep.subr.mxu0 0.0
    %711 = vmatpush1.msra.mxu0 0.0
    %712 = vmatprep.subr.mxu0 0.0
    %713 = vmatpush1.msra.mxu0 0.0
    %714 = vmatprep.subr.mxu0 0.0
    %715 = vmatpush1.msra.mxu0 0.0
    %716 = vmatprep.subr.mxu0 0.0
    %717 = vmatpush1.msra.mxu0 0.0
    %718 = vmatprep.subr.mxu0 0.0
    %719 = vmatpush1.msra.mxu0 0.0
    %720 = vmatprep.subr.mxu0 0.0
    %721 = vmatpush1.msra.mxu0 0.0
    %722 = vmatprep.subr.mxu0 0.0
    %723 = vmatpush1.msra.mxu0 0.0
    %724 = vmatprep.subr.mxu0 0.0
    %725 = vmatpush1.msra.mxu0 0.0
    %726 = vmatprep.subr.mxu0 0.0
    %727 = vmatpush1.msra.mxu0 0.0
    %728 = vmatprep.subr.mxu0 0.0
    %729 = vmatpush1.msra.mxu0 0.0
    %730 = vmatprep.subr.mxu0 0.0
    %731 = vmatpush1.msra.mxu0 0.0
    %732 = vmatprep.subr.mxu0 0.0
    %733 = vmatpush1.msra.mxu0 0.0
    %734 = vmatprep.subr.mxu0 0.0
    %735 = vmatpush1.msra.mxu0 0.0
    %736 = vmatprep.subr.mxu0 0.0
    %737 = vmatpush1.msra.mxu0 0.0
    %738 = vmatprep.subr.mxu0 0.0
    %739 = vmatpush1.msra.mxu0 0.0
    %740 = vmatprep.subr.mxu0 0.0
    %741 = vmatpush1.msra.mxu0 0.0
    %742 = vmatprep.subr.mxu0 0.0
    %743 = vmatpush1.msra.mxu0 0.0
    %744 = vmatprep.subr.mxu0 0.0
    %745 = vmatpush1.msra.mxu0 0.0
    %746 = vmatprep.subr.mxu0 0.0
    %747 = vmatpush1.msra.mxu0 0.0
    %748 = vmatprep.subr.mxu0 0.0
    %749 = vmatpush1.msra.mxu0 0.0
    %750 = vmatprep.subr.mxu0 0.0
    %751 = vmatpush1.msra.mxu0 0.0
    %752 = vmatprep.mubr.f32.mxu0 0.0
    %v753 = vand.u32 %v45, 4294901760
    %754 = vmatmul.mubr.f32.gmra.mrb[0].mxu0 %v753
    %v755 = vpop.f32.mrb[0].mxu0
    %v756 = vadd.f32 %v680, %v755
    %v757 = vpop.f32.mrb[0].mxu0
    %758 = vdwg.mxu0
    %759 = vmatprep.subr.mxu0 0.0
    %v760 = vand.u32 %v494, 4294901760
    %v761 = vsub.f32 %v494, %v760
    %762 = vmatpush1.msra.mxu0 %v761
    %763 = vmatprep.subr.mxu0 0.0
    %764 = vmatpush1.msra.mxu0 0.0
    %765 = vmatprep.subr.mxu0 0.0
    %766 = vmatpush1.msra.mxu0 0.0
    %767 = vmatprep.subr.mxu0 0.0
    %768 = vmatpush1.msra.mxu0 0.0
    %769 = vmatprep.subr.mxu0 0.0
    %770 = vmatpush1.msra.mxu0 0.0
    %771 = vmatprep.subr.mxu0 0.0
    %772 = vmatpush1.msra.mxu0 0.0
    %773 = vmatprep.subr.mxu0 0.0
    %774 = vmatpush1.msra.mxu0 0.0
    %775 = vmatprep.subr.mxu0 0.0
    %776 = vmatpush1.msra.mxu0 0.0
    %777 = vmatprep.subr.mxu0 0.0
    %778 = vmatpush1.msra.mxu0 0.0
    %779 = vmatprep.subr.mxu0 0.0
    %780 = vmatpush1.msra.mxu0 0.0
    %781 = vmatprep.subr.mxu0 0.0
    %782 = vmatpush1.msra.mxu0 0.0
    %783 = vmatprep.subr.mxu0 0.0
    %784 = vmatpush1.msra.mxu0 0.0
    %785 = vmatprep.subr.mxu0 0.0
    %786 = vmatpush1.msra.mxu0 0.0
    %787 = vmatprep.subr.mxu0 0.0
    %788 = vmatpush1.msra.mxu0 0.0
    %789 = vmatprep.subr.mxu0 0.0
    %790 = vmatpush1.msra.mxu0 0.0
    %791 = vmatprep.subr.mxu0 0.0
    %792 = vmatpush1.msra.mxu0 0.0
    %793 = vmatprep.subr.mxu0 0.0
    %794 = vmatpush1.msra.mxu0 0.0
    %795 = vmatprep.subr.mxu0 0.0
    %796 = vmatpush1.msra.mxu0 0.0
    %797 = vmatprep.subr.mxu0 0.0
    %798 = vmatpush1.msra.mxu0 0.0
    %799 = vmatprep.subr.mxu0 0.0
    %800 = vmatpush1.msra.mxu0 0.0
    %801 = vmatprep.subr.mxu0 0.0
    %802 = vmatpush1.msra.mxu0 0.0
    %803 = vmatprep.subr.mxu0 0.0
    %804 = vmatpush1.msra.mxu0 0.0
    %805 = vmatprep.subr.mxu0 0.0
    %806 = vmatpush1.msra.mxu0 0.0
    %807 = vmatprep.subr.mxu0 0.0
    %808 = vmatpush1.msra.mxu0 0.0
    %809 = vmatprep.subr.mxu0 0.0
    %810 = vmatpush1.msra.mxu0 0.0
    %811 = vmatprep.subr.mxu0 0.0
    %812 = vmatpush1.msra.mxu0 0.0
    %813 = vmatprep.subr.mxu0 0.0
    %814 = vmatpush1.msra.mxu0 0.0
    %815 = vmatprep.subr.mxu0 0.0
    %816 = vmatpush1.msra.mxu0 0.0
    %817 = vmatprep.subr.mxu0 0.0
    %818 = vmatpush1.msra.mxu0 0.0
    %819 = vmatprep.subr.mxu0 0.0
    %820 = vmatpush1.msra.mxu0 0.0
    %821 = vmatprep.subr.mxu0 0.0
    %822 = vmatpush1.msra.mxu0 0.0
    %823 = vmatprep.subr.mxu0 0.0
    %824 = vmatpush1.msra.mxu0 0.0
    %825 = vmatprep.mubr.f32.mxu0 0.0
    %v826 = vand.u32 %v45, 4294901760
    %v827 = vsub.f32 %v45, %v826
    %828 = vmatmul.mubr.f32.gmra.mrb[0].mxu0 %v827
    %v829 = vpop.f32.mrb[0].mxu0
    %v830 = vadd.f32 %v756, %v829
    %v831 = vpop.f32.mrb[0].mxu0
    %832 = vdwg.mxu0
    %833 = vmatprep.subr.mxu0 0.0
    %v834 = vand.u32 %v494, 4294901760
    %835 = vmatpush1.msra.mxu0 %v834
    %836 = vmatprep.subr.mxu0 0.0
    %837 = vmatpush1.msra.mxu0 0.0
    %838 = vmatprep.subr.mxu0 0.0
    %839 = vmatpush1.msra.mxu0 0.0
    %840 = vmatprep.subr.mxu0 0.0
    %841 = vmatpush1.msra.mxu0 0.0
    %842 = vmatprep.subr.mxu0 0.0
    %843 = vmatpush1.msra.mxu0 0.0
    %844 = vmatprep.subr.mxu0 0.0
    %845 = vmatpush1.msra.mxu0 0.0
    %846 = vmatprep.subr.mxu0 0.0
    %847 = vmatpush1.msra.mxu0 0.0
    %848 = vmatprep.subr.mxu0 0.0
    %849 = vmatpush1.msra.mxu0 0.0
    %850 = vmatprep.subr.mxu0 0.0
    %851 = vmatpush1.msra.mxu0 0.0
    %852 = vmatprep.subr.mxu0 0.0
    %853 = vmatpush1.msra.mxu0 0.0
    %854 = vmatprep.subr.mxu0 0.0
    %855 = vmatpush1.msra.mxu0 0.0
    %856 = vmatprep.subr.mxu0 0.0
    %857 = vmatpush1.msra.mxu0 0.0
    %858 = vmatprep.subr.mxu0 0.0
    %859 = vmatpush1.msra.mxu0 0.0
    %860 = vmatprep.subr.mxu0 0.0
    %861 = vmatpush1.msra.mxu0 0.0
    %862 = vmatprep.subr.mxu0 0.0
    %863 = vmatpush1.msra.mxu0 0.0
    %864 = vmatprep.subr.mxu0 0.0
    %865 = vmatpush1.msra.mxu0 0.0
    %866 = vmatprep.subr.mxu0 0.0
    %867 = vmatpush1.msra.mxu0 0.0
    %868 = vmatprep.subr.mxu0 0.0
    %869 = vmatpush1.msra.mxu0 0.0
    %870 = vmatprep.subr.mxu0 0.0
    %871 = vmatpush1.msra.mxu0 0.0
    %872 = vmatprep.subr.mxu0 0.0
    %873 = vmatpush1.msra.mxu0 0.0
    %874 = vmatprep.subr.mxu0 0.0
    %875 = vmatpush1.msra.mxu0 0.0
    %876 = vmatprep.subr.mxu0 0.0
    %877 = vmatpush1.msra.mxu0 0.0
    %878 = vmatprep.subr.mxu0 0.0
    %879 = vmatpush1.msra.mxu0 0.0
    %880 = vmatprep.subr.mxu0 0.0
    %881 = vmatpush1.msra.mxu0 0.0
    %882 = vmatprep.subr.mxu0 0.0
    %883 = vmatpush1.msra.mxu0 0.0
    %884 = vmatprep.subr.mxu0 0.0
    %885 = vmatpush1.msra.mxu0 0.0
    %886 = vmatprep.subr.mxu0 0.0
    %887 = vmatpush1.msra.mxu0 0.0
    %888 = vmatprep.subr.mxu0 0.0
    %889 = vmatpush1.msra.mxu0 0.0
    %890 = vmatprep.subr.mxu0 0.0
    %891 = vmatpush1.msra.mxu0 0.0
    %892 = vmatprep.subr.mxu0 0.0
    %893 = vmatpush1.msra.mxu0 0.0
    %894 = vmatprep.subr.mxu0 0.0
    %895 = vmatpush1.msra.mxu0 0.0
    %896 = vmatprep.subr.mxu0 0.0
    %897 = vmatpush1.msra.mxu0 0.0
    %898 = vmatprep.mubr.f32.mxu0 0.0
    %v899 = vand.u32 %v45, 4294901760
    %v900 = vsub.f32 %v45, %v899
    %v901 = vand.u32 %v900, 4294901760
    %902 = vmatmul.mubr.f32.gmra.mrb[0].mxu0 %v901
    %v903 = vpop.f32.mrb[0].mxu0
    %v904 = vadd.f32 %v830, %v903
    %v905 = vpop.f32.mrb[0].mxu0
    %906 = vdwg.mxu0
    %907 = vmatprep.subr.mxu0 0.0
    %v908 = vand.u32 %v494, 4294901760
    %v909 = vsub.f32 %v494, %v908
    %v910 = vand.u32 %v909, 4294901760
    %911 = vmatpush1.msra.mxu0 %v910
    %912 = vmatprep.subr.mxu0 0.0
    %913 = vmatpush1.msra.mxu0 0.0
    %914 = vmatprep.subr.mxu0 0.0
    %915 = vmatpush1.msra.mxu0 0.0
    %916 = vmatprep.subr.mxu0 0.0
    %917 = vmatpush1.msra.mxu0 0.0
    %918 = vmatprep.subr.mxu0 0.0
    %919 = vmatpush1.msra.mxu0 0.0
    %920 = vmatprep.subr.mxu0 0.0
    %921 = vmatpush1.msra.mxu0 0.0
    %922 = vmatprep.subr.mxu0 0.0
    %923 = vmatpush1.msra.mxu0 0.0
    %924 = vmatprep.subr.mxu0 0.0
    %925 = vmatpush1.msra.mxu0 0.0
    %926 = vmatprep.subr.mxu0 0.0
    %927 = vmatpush1.msra.mxu0 0.0
    %928 = vmatprep.subr.mxu0 0.0
    %929 = vmatpush1.msra.mxu0 0.0
    %930 = vmatprep.subr.mxu0 0.0
    %931 = vmatpush1.msra.mxu0 0.0
    %932 = vmatprep.subr.mxu0 0.0
    %933 = vmatpush1.msra.mxu0 0.0
    %934 = vmatprep.subr.mxu0 0.0
    %935 = vmatpush1.msra.mxu0 0.0
    %936 = vmatprep.subr.mxu0 0.0
    %937 = vmatpush1.msra.mxu0 0.0
    %938 = vmatprep.subr.mxu0 0.0
    %939 = vmatpush1.msra.mxu0 0.0
    %940 = vmatprep.subr.mxu0 0.0
    %941 = vmatpush1.msra.mxu0 0.0
    %942 = vmatprep.subr.mxu0 0.0
    %943 = vmatpush1.msra.mxu0 0.0
    %944 = vmatprep.subr.mxu0 0.0
    %945 = vmatpush1.msra.mxu0 0.0
    %946 = vmatprep.subr.mxu0 0.0
    %947 = vmatpush1.msra.mxu0 0.0
    %948 = vmatprep.subr.mxu0 0.0
    %949 = vmatpush1.msra.mxu0 0.0
    %950 = vmatprep.subr.mxu0 0.0
    %951 = vmatpush1.msra.mxu0 0.0
    %952 = vmatprep.subr.mxu0 0.0
    %953 = vmatpush1.msra.mxu0 0.0
    %954 = vmatprep.subr.mxu0 0.0
    %955 = vmatpush1.msra.mxu0 0.0
    %956 = vmatprep.subr.mxu0 0.0
    %957 = vmatpush1.msra.mxu0 0.0
    %958 = vmatprep.subr.mxu0 0.0
    %959 = vmatpush1.msra.mxu0 0.0
    %960 = vmatprep.subr.mxu0 0.0
    %961 = vmatpush1.msra.mxu0 0.0
    %962 = vmatprep.subr.mxu0 0.0
    %963 = vmatpush1.msra.mxu0 0.0
    %964 = vmatprep.subr.mxu0 0.0
    %965 = vmatpush1.msra.mxu0 0.0
    %966 = vmatprep.subr.mxu0 0.0
    %967 = vmatpush1.msra.mxu0 0.0
    %968 = vmatprep.subr.mxu0 0.0
    %969 = vmatpush1.msra.mxu0 0.0
    %970 = vmatprep.subr.mxu0 0.0
    %971 = vmatpush1.msra.mxu0 0.0
    %972 = vmatprep.subr.mxu0 0.0
    %973 = vmatpush1.msra.mxu0 0.0
    %974 = vmatprep.mubr.f32.mxu0 0.0
    %v975 = vand.u32 %v45, 4294901760
    %976 = vmatmul.mubr.f32.gmra.mrb[0].mxu0 %v975
    %v977 = vpop.f32.mrb[0].mxu0
    %v978 = vadd.f32 %v904, %v977
    %v979 = vpop.f32.mrb[0].mxu0
    %980 = vdwg.mxu0
    %981 = vmatprep.subr.mxu0 0.0
    %v982 = vand.u32 %v494, 4294901760
    %983 = vmatpush1.msra.mxu0 %v982
    %984 = vmatprep.subr.mxu0 0.0
    %985 = vmatpush1.msra.mxu0 0.0
    %986 = vmatprep.subr.mxu0 0.0
    %987 = vmatpush1.msra.mxu0 0.0
    %988 = vmatprep.subr.mxu0 0.0
    %989 = vmatpush1.msra.mxu0 0.0
    %990 = vmatprep.subr.mxu0 0.0
    %991 = vmatpush1.msra.mxu0 0.0
    %992 = vmatprep.subr.mxu0 0.0
    %993 = vmatpush1.msra.mxu0 0.0
    %994 = vmatprep.subr.mxu0 0.0
    %995 = vmatpush1.msra.mxu0 0.0
    %996 = vmatprep.subr.mxu0 0.0
    %997 = vmatpush1.msra.mxu0 0.0
    %998 = vmatprep.subr.mxu0 0.0
    %999 = vmatpush1.msra.mxu0 0.0
    %1000 = vmatprep.subr.mxu0 0.0
    %1001 = vmatpush1.msra.mxu0 0.0
    %1002 = vmatprep.subr.mxu0 0.0
    %1003 = vmatpush1.msra.mxu0 0.0
    %1004 = vmatprep.subr.mxu0 0.0
    %1005 = vmatpush1.msra.mxu0 0.0
    %1006 = vmatprep.subr.mxu0 0.0
    %1007 = vmatpush1.msra.mxu0 0.0
    %1008 = vmatprep.subr.mxu0 0.0
    %1009 = vmatpush1.msra.mxu0 0.0
    %1010 = vmatprep.subr.mxu0 0.0
    %1011 = vmatpush1.msra.mxu0 0.0
    %1012 = vmatprep.subr.mxu0 0.0
    %1013 = vmatpush1.msra.mxu0 0.0
    %1014 = vmatprep.subr.mxu0 0.0
    %1015 = vmatpush1.msra.mxu0 0.0
    %1016 = vmatprep.subr.mxu0 0.0
    %1017 = vmatpush1.msra.mxu0 0.0
    %1018 = vmatprep.subr.mxu0 0.0
    %1019 = vmatpush1.msra.mxu0 0.0
    %1020 = vmatprep.subr.mxu0 0.0
    %1021 = vmatpush1.msra.mxu0 0.0
    %1022 = vmatprep.subr.mxu0 0.0
    %1023 = vmatpush1.msra.mxu0 0.0
    %1024 = vmatprep.subr.mxu0 0.0
    %1025 = vmatpush1.msra.mxu0 0.0
    %1026 = vmatprep.subr.mxu0 0.0
    %1027 = vmatpush1.msra.mxu0 0.0
    %1028 = vmatprep.subr.mxu0 0.0
    %1029 = vmatpush1.msra.mxu0 0.0
    %1030 = vmatprep.subr.mxu0 0.0
    %1031 = vmatpush1.msra.mxu0 0.0
    %1032 = vmatprep.subr.mxu0 0.0
    %1033 = vmatpush1.msra.mxu0 0.0
    %1034 = vmatprep.subr.mxu0 0.0
    %1035 = vmatpush1.msra.mxu0 0.0
    %1036 = vmatprep.subr.mxu0 0.0
    %1037 = vmatpush1.msra.mxu0 0.0
    %1038 = vmatprep.subr.mxu0 0.0
    %1039 = vmatpush1.msra.mxu0 0.0
    %1040 = vmatprep.subr.mxu0 0.0
    %1041 = vmatpush1.msra.mxu0 0.0
    %1042 = vmatprep.subr.mxu0 0.0
    %1043 = vmatpush1.msra.mxu0 0.0
    %1044 = vmatprep.subr.mxu0 0.0
    %1045 = vmatpush1.msra.mxu0 0.0
    %1046 = vmatprep.mubr.f32.mxu0 0.0
    %v1047 = vand.u32 %v45, 4294901760
    %1048 = vmatmul.mubr.f32.gmra.mrb[0].mxu0 %v1047
    %v1049 = vpop.f32.mrb[0].mxu0
    %v1050 = vadd.f32 %v978, %v1049
    %v1051 = vpop.f32.mrb[0].mxu0
    %1052 = vdwg.mxu0
    %1053 = vst [vmem:[#allocation7] sm:$0xff] %v1050
    // Predicated region
    $region22: #{tpu_custom_call.1} parent=1 // pred_check
      _
    $region23: #{tpu_custom_call.1} parent=1 // pred_check_branch
      %1055 = sbr.rel (0) target = $region25
    $region24: #{tpu_custom_call.1} parent=1 // pred_region
      %s1057 = ssub.s32 128, 128
      %1058 = vsyncadd [#allocation4], %s1057
      %s1060 = sshll.u32 [#allocation7], 4
      %s1061 = int_to_ptr.vmem [resolvable:$true] %s1060
      %1063 = dma.vmem_to_hbm [thread:$0]  %s1061, 128, %s3, [#allocation4]
    $region25: #{tpu_custom_call.1} parent=1 // pred_fallthru
      _
    // Predicated region
    $region26: #{tpu_custom_call.1} parent=1 // pred_check
      _
    $region27: #{tpu_custom_call.1} parent=1 // pred_check_branch
      %1065 = sbr.rel (0) target = $region29
    $region28: #{tpu_custom_call.1} parent=1 // pred_region
      %1066 = dma.done [#allocation4], 128
    $region29: #{tpu_custom_call.1} parent=1 // pred_fallthru
      _
    %1067 = vsyncpa [#allocation3], 1
    %1068 = vsyncpa [#allocation6], 1
    %1069 = vsyncpa [#allocation4], 1

</llo_original>
